<compile_context>
chip_gen: v7x
topology: tpu7x:2x2x1
jax: 0.10.0
libtpu: 0.0.40
codegen_flags: <defaults>
</compile_context>

<pallas_src>
import jax
import jax.numpy as jnp
from jax.experimental import pallas as pl
from jax.experimental.pallas import tpu as pltpu


_STRIDE = 4  # backbone / head common stride


# --------------------------------------------------------------------------
# small helpers
# --------------------------------------------------------------------------

def _round_up(x, m):
    return (x + m - 1) // m * m


def _choose_tm(M, target=512):
    """M tile for the fused matmul.

    Pick the largest multiple-of-8 divisor of M not exceeding `target`, so the
    patch matrix never needs a padded HBM copy, with a mild preference for an
    even grid-step count (v7x shards the "parallel" axis across 2 TensorCores;
    on single-TC v5e/v6e the preference costs essentially nothing).  A large
    tile amortizes the ~0.35 us per-grid-step overhead; VMEM stays trivial
    (even tm=1024 with double-buffered x/out + the feats tile is <2 MiB)."""
    if M <= target:
        return _round_up(M, 8)
    candidates = [t for t in range(8, target + 1, 8) if M % t == 0]
    if not candidates:
        return target                       # fall back to padding the M dim
    best_any = max(candidates)
    even = [t for t in candidates if (M // t) % 2 == 0]
    best_even = max(even) if even else 0
    return best_even if best_even * 2 >= best_any else best_any


def _space_to_depth(x, p=_STRIDE):
    # NCHW -> (B, H/p, W/p, C*p*p); patch column k comes from channel k // (p*p).
    B, C, H, W = x.shape
    x = x.reshape(B, C, H // p, p, W // p, p)
    x = jnp.transpose(x, (0, 2, 4, 1, 3, 5))
    return x.reshape(B, H // p, W // p, C * p * p)


def _upsample_matrix(n_in, factor):
    """(n_in*factor, n_in) bilinear interpolation matrix, half-pixel centers
    (matches F.interpolate(mode='bilinear', align_corners=False) and
    jax.image.resize('bilinear') for integer upsampling factors; edge clamping
    is equivalent to resize's weight renormalization)."""
    n_out = n_in * factor
    x = (jnp.arange(n_out, dtype=jnp.float32) + 0.5) / factor - 0.5
    x0 = jnp.floor(x)
    frac = x - x0
    i0 = jnp.clip(x0.astype(jnp.int32), 0, n_in - 1)
    i1 = jnp.clip(x0.astype(jnp.int32) + 1, 0, n_in - 1)
    cols = jnp.arange(n_in)
    m = ((cols[None, :] == i0[:, None]) * (1.0 - frac)[:, None]
         + (cols[None, :] == i1[:, None]) * frac[:, None])
    return m.astype(jnp.float32)


# --------------------------------------------------------------------------
# Pallas kernels
# --------------------------------------------------------------------------

def _stem_head_kernel(x_ref, wb_ref, bb_ref, wh_ref, bh_ref, o_ref):
    # Fused backbone stem + sem_seg head classifier for one M tile:
    #   feats  = relu(x @ Wb' + bb')      (bf16 x bf16 -> f32 on the MXU;
    #                                      pixel normalization folded into Wb'/bb')
    #   logits = feats @ Wh + bh          (bf16 x bf16 -> f32 on the MXU)
    # The (tm, F) feature tile never leaves VMEM; the class dim is NOT padded,
    # so only NC lanes are written back per row.
    feats = jnp.dot(x_ref[...], wb_ref[...], preferred_element_type=jnp.float32)
    feats = jnp.maximum(feats + bb_ref[...], 0.0)
    logits = jnp.dot(feats.astype(jnp.bfloat16), wh_ref[...],
                     preferred_element_type=jnp.float32)
    o_ref[...] = (logits + bh_ref[...]).astype(o_ref.dtype)


def _fused_stem_head(x, wb, bb, wh, bh, *, tm_target=512):
    """x: (M, K) bf16 patch matrix of RAW pixels (normalization pre-folded into
    wb/bb).  Returns (M, NC) f32 logits in a single Pallas call."""
    M, K = x.shape
    F = wb.shape[1]
    NC = wh.shape[1]
    Fp = _round_up(F, 128)       # lane-dense feats in VMEM; weights are tiny

    tm = _choose_tm(M, tm_target)
    M_pad = _round_up(M, tm)

    xb = x if x.dtype == jnp.bfloat16 else x.astype(jnp.bfloat16)
    if M_pad != M:               # only when M has no usable multiple-of-8 divisor
        xb = jnp.pad(xb, ((0, M_pad - M), (0, 0)))
    wb_p = jnp.pad(wb, ((0, 0), (0, Fp - F))).astype(jnp.bfloat16)
    bb_p = jnp.pad(bb, (0, Fp - F)).reshape(1, Fp).astype(jnp.float32)
    wh_p = jnp.pad(wh, ((0, Fp - F), (0, 0))).astype(jnp.bfloat16)
    bh_p = bh.reshape(1, NC).astype(jnp.float32)

    out = pl.pallas_call(
        _stem_head_kernel,
        out_shape=jax.ShapeDtypeStruct((M_pad, NC), jnp.float32),
        grid=(M_pad // tm,),
        in_specs=[
            pl.BlockSpec((tm, K), lambda i: (i, 0)),
            pl.BlockSpec((K, Fp), lambda i: (0, 0)),
            pl.BlockSpec((1, Fp), lambda i: (0, 0)),
            pl.BlockSpec((Fp, NC), lambda i: (0, 0)),
            pl.BlockSpec((1, NC), lambda i: (0, 0)),
        ],
        out_specs=pl.BlockSpec((tm, NC), lambda i: (i, 0)),
        compiler_params=pltpu.CompilerParams(
            dimension_semantics=("parallel",)),
    )(xb, wb_p, bb_p, wh_p, bh_p)

    return out if M_pad == M else out[:M]


def _upsample_kernel(x_ref, uwt_ref, uh_ref, o_ref):
    # One (b, c) plane per grid step: Y = Uh @ (X @ Uw^T).
    # Two tiny f32 interpolation matmuls on the otherwise-idle MXU; the
    # full-resolution plane is written exactly once (the binding resource of
    # this whole pipeline is HBM writeback of the result).
    tmp = jnp.dot(x_ref[...], uwt_ref[...], preferred_element_type=jnp.float32)
    o_ref[...] = jnp.dot(uh_ref[...], tmp,
                         preferred_element_type=jnp.float32).astype(o_ref.dtype)


def _bilinear_upsample_x4(x, *, factor=_STRIDE):
    """x: (B*NC, Hs, Ws) f32 stride-4 logits -> (B*NC, Hs*4, Ws*4) f32,
    half-pixel-center bilinear (== F.interpolate(align_corners=False)).

    Per-plane VMEM: ~2x(H*W*4) for the double-buffered output plus the two
    interpolation matrices and the input plane; comfortably under the default
    scoped VMEM for typical segmentation resolutions (raise vmem_limit_bytes
    or tile the H axis only for very large planes on v7x's 64 MiB VMEM)."""
    BC, Hs, Ws = x.shape
    H, W = Hs * factor, Ws * factor
    uh = _upsample_matrix(Hs, factor)           # (H, Hs)
    uwt = _upsample_matrix(Ws, factor).T        # (Ws, W)
    return pl.pallas_call(
        _upsample_kernel,
        out_shape=jax.ShapeDtypeStruct((BC, H, W), x.dtype),
        grid=(BC,),
        in_specs=[
            pl.BlockSpec((None, Hs, Ws), lambda i: (i, 0, 0)),
            pl.BlockSpec((Ws, W), lambda i: (0, 0)),
            pl.BlockSpec((H, Hs), lambda i: (0, 0)),
        ],
        out_specs=pl.BlockSpec((None, H, W), lambda i: (i, 0, 0)),
        compiler_params=pltpu.CompilerParams(
            dimension_semantics=("parallel",)),
    )(x, uwt, uh)


# --------------------------------------------------------------------------
# Model pieces (glue in plain JAX, compute in Pallas)
# --------------------------------------------------------------------------

def compute_flow(image_shape, scale_factor=0.25):
    """Mirror of VideoSemanticSegmentor_DA.compute_flow.

    TODO(synk): FlowNet2 (external pretrained optical-flow CNN) and Resample2d
    have no clean Pallas equivalent -> flow is taken as zero.  With zero flow
    warp_img == ref_img, and ref_img is built from the same batched_inputs with
    the same normalization as img, so sum_c(img - warp_img) == 0 and
    occ_mask == exp(-50 * 0^2) == 1 exactly; the two denormalize passes and the
    occlusion-mask kernel are therefore skipped (pure HBM bandwidth savings).
    """
    B, C, H, W = image_shape
    if scale_factor != 1:
        h, w = int(H * scale_factor), int(W * scale_factor)
    else:
        h, w = H, W
    flow = jnp.zeros((B, 2, h, w), jnp.float32)
    occ_mask = jnp.ones((B, 1, h, w), jnp.float32)
    return flow, occ_mask


def video_semantic_segmentor_forward(raw_images, params, pixel_mean, pixel_std):
    """Inference forward of VideoSemanticSegmentor_DA on already-batched images.

    raw_images: (B, C, H, W) float32 images in [0, 255] (DatasetMapper "image").
    Returns (processed_results, flow, occ_mask) where processed_results is a
    list of {"sem_seg": (num_classes, H, W)} per image.
    """
    B, C, H, W = raw_images.shape
    p = _STRIDE
    pp = p * p
    K = C * pp
    NC = params["head_w"].shape[1]

    # images = (x - mean) / std is affine per input channel; after space-to-depth
    # patch column k comes from channel k // (p*p), so the normalization is
    # folded into the stem weights once:
    #   Wb' = diag(scale_col) @ Wb,   bb' = bb + bias_col @ Wb.
    # This deletes the full-resolution normalization pallas_call (and its HBM
    # read+write) from the inference path.  ref_images would be the very same
    # normalized tensor -> computed once / never materialized (dedup).
    inv_std = (1.0 / pixel_std).astype(jnp.float32)          # (C,)
    bias_c = (-pixel_mean * inv_std).astype(jnp.float32)     # (C,)
    scale_col = jnp.repeat(inv_std, pp)                      # (K,)
    bias_col = jnp.repeat(bias_c, pp)                        # (K,)
    wb = params["backbone_w"].astype(jnp.float32)
    wb_folded = wb * scale_col[:, None]
    bb_folded = params["backbone_b"].astype(jnp.float32) + bias_col @ wb

    flow, occ_mask = compute_flow((B, C, H, W), scale_factor=0.25)

    # bf16 cast BEFORE space-to-depth so the convert fuses into the transpose
    # (halves the transpose traffic).  Backbone stem + head classifier are one
    # fused Pallas call operating on raw-pixel patches.
    patches = _space_to_depth(raw_images.astype(jnp.bfloat16))   # (B, Hs, Ws, K)
    _, Hs, Ws, _ = patches.shape
    logits = _fused_stem_head(patches.reshape(B * Hs * Ws, K),
                              wb_folded, bb_folded,
                              params["head_w"], params["head_b"])
    logits = logits.reshape(B, Hs, Ws, NC)

    # TODO(synk): features_ref = backbone(ref_images) is computed by the
    # reference but never consumed at inference; with ref_images == images it
    # would equal features_main anyway, so it is not materialized.

    # NHWC -> NCHW at stride-4 resolution (1/16 of the data), then the Pallas
    # bilinear upsample writes the full-resolution NCHW result exactly once.
    l4 = jnp.transpose(logits, (0, 3, 1, 2)).reshape(B * NC, Hs, Ws)
    results = _bilinear_upsample_x4(l4, factor=p).reshape(B, NC, H, W)

    # sem_seg_postprocess: crop to image_size and resize to (height, width);
    # output size == input size here, so it is the identity.
    processed_results = [{"sem_seg": results[i]} for i in range(B)]
    return processed_results, flow, occ_mask


# --------------------------------------------------------------------------
# Driver
# --------------------------------------------------------------------------

if __name__ == "__main__":
    key = jax.random.PRNGKey(0)
    B, C, H, W = 2, 3, 32, 32
    FEAT, NUM_CLASSES = 32, 8

    k_img, k_w1, k_w2 = jax.random.split(key, 3)
    raw_images = jax.random.uniform(k_img, (B, C, H, W), jnp.float32, 0.0, 255.0)

    params = {
        "backbone_w": 0.05 * jax.random.normal(
            k_w1, (C * _STRIDE * _STRIDE, FEAT), jnp.float32),
        "backbone_b": jnp.zeros((FEAT,), jnp.float32),
        "head_w": 0.05 * jax.random.normal(k_w2, (FEAT, NUM_CLASSES), jnp.float32),
        "head_b": jnp.zeros((NUM_CLASSES,), jnp.float32),
    }

    pixel_mean = jnp.array([123.675, 116.28, 103.53], jnp.float32)  # cfg.MODEL.PIXEL_MEAN
    pixel_std = jnp.array([58.395, 57.12, 57.375], jnp.float32)     # cfg.MODEL.PIXEL_STD

    fwd = jax.jit(video_semantic_segmentor_forward)
    processed, flow, occ_mask = fwd(raw_images, params, pixel_mean, pixel_std)
    jax.block_until_ready((processed, flow, occ_mask))

    # Shape checks (match the PyTorch module's inference outputs).
    assert processed[0]["sem_seg"].shape == (NUM_CLASSES, H, W)
    assert flow.shape == (B, 2, H // 4, W // 4)
    assert occ_mask.shape == (B, 1, H // 4, W // 4)

    # Numerical sanity check vs a plain-JAX reference that follows the original
    # module's order of operations (normalize -> stem -> head -> bilinear
    # upsample with jax.image.resize), using the same bf16 matmul dtype.
    inv_std = 1.0 / pixel_std
    imgs_norm = (raw_images * inv_std[None, :, None, None]
                 + (-pixel_mean * inv_std)[None, :, None, None])
    p_ref = _space_to_depth(imgs_norm).reshape(-1, C * _STRIDE * _STRIDE)
    f_ref = jnp.maximum(
        jnp.dot(p_ref.astype(jnp.bfloat16), params["backbone_w"].astype(jnp.bfloat16),
                preferred_element_type=jnp.float32) + params["backbone_b"], 0.0)
    l_ref = jnp.dot(f_ref.astype(jnp.bfloat16), params["head_w"].astype(jnp.bfloat16),
                    preferred_element_type=jnp.float32) + params["head_b"]
    l_ref = l_ref.reshape(B, H // _STRIDE, W // _STRIDE, NUM_CLASSES)
    r_ref = jax.image.resize(jnp.transpose(l_ref, (0, 3, 1, 2)),
                             (B, NUM_CLASSES, H, W), method="bilinear")
    got = jnp.stack([d["sem_seg"] for d in processed])
    max_err = float(jnp.max(jnp.abs(got - r_ref)))
    assert max_err < 5e-2, f"max abs error {max_err}"

    print("KERNEL_OK")
</pallas_src>

<mosaic_0001>
module attributes {stable_mosaic.version = 11 : i64} {
  func.func @_stem_head_kernel(%arg0: i32, %arg1: memref<128x48xbf16, #tpu.memory_space<vmem>>, %arg2: memref<48x128xbf16, #tpu.memory_space<vmem>>, %arg3: memref<1x128xf32, #tpu.memory_space<vmem>>, %arg4: memref<128x8xbf16, #tpu.memory_space<vmem>>, %arg5: memref<1x8xf32, #tpu.memory_space<vmem>>, %arg6: memref<128x8xf32, #tpu.memory_space<vmem>>) attributes {dimension_semantics = [#tpu.dimension_semantics<parallel>], iteration_bounds = array<i64: 1>, scalar_prefetch = 0 : i64, scratch_operands = 0 : i64, tpu.core_type = #tpu.core_type<tc>, window_params = [{transform_indices = @transform_0, window_bounds = array<i64: 128, 48>}, {pipeline_mode = #tpu.pipeline_mode<synchronous>, transform_indices = @transform_1, window_bounds = array<i64: 48, 128>}, {pipeline_mode = #tpu.pipeline_mode<synchronous>, transform_indices = @transform_2, window_bounds = array<i64: 1, 128>}, {pipeline_mode = #tpu.pipeline_mode<synchronous>, transform_indices = @transform_3, window_bounds = array<i64: 128, 8>}, {pipeline_mode = #tpu.pipeline_mode<synchronous>, transform_indices = @transform_4, window_bounds = array<i64: 1, 8>}, {transform_indices = @transform_5, window_bounds = array<i64: 128, 8>}]} {
    %c0 = arith.constant 0 : index
    %c0_0 = arith.constant 0 : index
    %0 = vector.load %arg1[%c0, %c0_0] : memref<128x48xbf16, #tpu.memory_space<vmem>>, vector<128x48xbf16>
    %c0_1 = arith.constant 0 : index
    %c0_2 = arith.constant 0 : index
    %1 = vector.load %arg2[%c0_1, %c0_2] : memref<48x128xbf16, #tpu.memory_space<vmem>>, vector<48x128xbf16>
    %cst = arith.constant dense<0.000000e+00> : vector<128x128xf32>
    %2 = tpu.matmul %0, %1, %cst {dimension_numbers = #tpu.dot_dimension_numbers<[1], [0], [0], [1], [0, 0, 1, 1], [], []>} : vector<128x48xbf16>, vector<48x128xbf16>, vector<128x128xf32> -> vector<128x128xf32>
    %c0_3 = arith.constant 0 : index
    %c0_4 = arith.constant 0 : index
    %3 = vector.load %arg3[%c0_3, %c0_4] : memref<1x128xf32, #tpu.memory_space<vmem>>, vector<1x128xf32>
    %4 = vector.broadcast %3 : vector<1x128xf32> to vector<128x128xf32>
    %5 = arith.addf %2, %4 : vector<128x128xf32>
    %cst_5 = arith.constant 0.000000e+00 : f32
    %6 = vector.broadcast %cst_5 : f32 to vector<128x128xf32>
    %7 = arith.maximumf %5, %6 : vector<128x128xf32>
    %8 = arith.truncf %7 : vector<128x128xf32> to vector<128x128xbf16>
    %c0_6 = arith.constant 0 : index
    %c0_7 = arith.constant 0 : index
    %9 = vector.load %arg4[%c0_6, %c0_7] : memref<128x8xbf16, #tpu.memory_space<vmem>>, vector<128x8xbf16>
    %cst_8 = arith.constant dense<0.000000e+00> : vector<128x8xf32>
    %10 = tpu.matmul %8, %9, %cst_8 {dimension_numbers = #tpu.dot_dimension_numbers<[1], [0], [0], [1], [0, 0, 1, 1], [], []>} : vector<128x128xbf16>, vector<128x8xbf16>, vector<128x8xf32> -> vector<128x8xf32>
    %c0_9 = arith.constant 0 : index
    %c0_10 = arith.constant 0 : index
    %11 = vector.load %arg5[%c0_9, %c0_10] : memref<1x8xf32, #tpu.memory_space<vmem>>, vector<1x8xf32>
    %12 = vector.broadcast %11 : vector<1x8xf32> to vector<128x8xf32>
    %13 = arith.addf %10, %12 : vector<128x8xf32>
    %c0_11 = arith.constant 0 : index
    %c0_12 = arith.constant 0 : index
    %14 = vector.load %arg6[%c0_11, %c0_12] : memref<128x8xf32, #tpu.memory_space<vmem>>, vector<128x8xf32>
    tpu.vector_store %arg6[%c0_11, %c0_12], %13 {strides = array<i32>} : memref<128x8xf32, #tpu.memory_space<vmem>>, vector<128x8xf32>,
    return
  }
  func.func @transform_0(%arg0: i32) -> (i32, i32) {
    %c0_i32 = arith.constant 0 : i32
    %c0_i32_0 = arith.constant 0 : i32
    return %arg0, %c0_i32 : i32, i32
  }
  func.func @transform_1(%arg0: i32) -> (i32, i32) {
    %c0_i32 = arith.constant 0 : i32
    %c0_i32_0 = arith.constant 0 : i32
    %c0_i32_1 = arith.constant 0 : i32
    return %c0_i32, %c0_i32_0 : i32, i32
  }
  func.func @transform_2(%arg0: i32) -> (i32, i32) {
    %c0_i32 = arith.constant 0 : i32
    %c0_i32_0 = arith.constant 0 : i32
    %c0_i32_1 = arith.constant 0 : i32
    return %c0_i32, %c0_i32_0 : i32, i32
  }
  func.func @transform_3(%arg0: i32) -> (i32, i32) {
    %c0_i32 = arith.constant 0 : i32
    %c0_i32_0 = arith.constant 0 : i32
    %c0_i32_1 = arith.constant 0 : i32
    return %c0_i32, %c0_i32_0 : i32, i32
  }
  func.func @transform_4(%arg0: i32) -> (i32, i32) {
    %c0_i32 = arith.constant 0 : i32
    %c0_i32_0 = arith.constant 0 : i32
    %c0_i32_1 = arith.constant 0 : i32
    return %c0_i32, %c0_i32_0 : i32, i32
  }
  func.func @transform_5(%arg0: i32) -> (i32, i32) {
    %c0_i32 = arith.constant 0 : i32
    %c0_i32_0 = arith.constant 0 : i32
    return %arg0, %c0_i32 : i32, i32
  }
}

module attributes {stable_mosaic.version = 11 : i64} {
  func.func @_upsample_kernel(%arg0: i32, %arg1: memref<1x8x8xf32, #tpu.memory_space<vmem>>, %arg2: memref<8x32xf32, #tpu.memory_space<vmem>>, %arg3: memref<32x8xf32, #tpu.memory_space<vmem>>, %arg4: memref<1x32x32xf32, #tpu.memory_space<vmem>>) attributes {dimension_semantics = [#tpu.dimension_semantics<parallel>], iteration_bounds = array<i64: 16>, scalar_prefetch = 0 : i64, scratch_operands = 0 : i64, tpu.core_type = #tpu.core_type<tc>, window_params = [{transform_indices = @transform_0, window_bounds = array<i64: 1, 8, 8>}, {pipeline_mode = #tpu.pipeline_mode<synchronous>, transform_indices = @transform_1, window_bounds = array<i64: 8, 32>}, {pipeline_mode = #tpu.pipeline_mode<synchronous>, transform_indices = @transform_2, window_bounds = array<i64: 32, 8>}, {transform_indices = @transform_3, window_bounds = array<i64: 1, 32, 32>}]} {
    %c0 = arith.constant 0 : index
    %c0_0 = arith.constant 0 : index
    %c0_1 = arith.constant 0 : index
    %0 = vector.load %arg1[%c0, %c0_0, %c0_1] : memref<1x8x8xf32, #tpu.memory_space<vmem>>, vector<1x8x8xf32>
    %1 = vector.shape_cast %0 : vector<1x8x8xf32> to vector<8x8xf32>
    %c0_2 = arith.constant 0 : index
    %c0_3 = arith.constant 0 : index
    %2 = vector.load %arg2[%c0_2, %c0_3] : memref<8x32xf32, #tpu.memory_space<vmem>>, vector<8x32xf32>
    %cst = arith.constant dense<0.000000e+00> : vector<8x32xf32>
    %3 = tpu.matmul %1, %2, %cst {dimension_numbers = #tpu.dot_dimension_numbers<[1], [0], [0], [1], [0, 0, 1, 1], [], []>} : vector<8x8xf32>, vector<8x32xf32>, vector<8x32xf32> -> vector<8x32xf32>
    %c0_4 = arith.constant 0 : index
    %c0_5 = arith.constant 0 : index
    %4 = vector.load %arg3[%c0_4, %c0_5] : memref<32x8xf32, #tpu.memory_space<vmem>>, vector<32x8xf32>
    %cst_6 = arith.constant dense<0.000000e+00> : vector<32x32xf32>
    %5 = tpu.matmul %4, %3, %cst_6 {dimension_numbers = #tpu.dot_dimension_numbers<[1], [0], [0], [1], [0, 0, 1, 1], [], []>} : vector<32x8xf32>, vector<8x32xf32>, vector<32x32xf32> -> vector<32x32xf32>
    %c0_7 = arith.constant 0 : index
    %c0_8 = arith.constant 0 : index
    %c0_9 = arith.constant 0 : index
    %6 = vector.load %arg4[%c0_7, %c0_8, %c0_9] : memref<1x32x32xf32, #tpu.memory_space<vmem>>, vector<1x32x32xf32>
    %7 = vector.shape_cast %6 : vector<1x32x32xf32> to vector<32x32xf32>
    %8 = vector.shape_cast %5 : vector<32x32xf32> to vector<1x32x32xf32>
    tpu.vector_store %arg4[%c0_7, %c0_8, %c0_9], %8 {strides = array<i32>} : memref<1x32x32xf32, #tpu.memory_space<vmem>>, vector<1x32x32xf32>,
    return
  }
  func.func @transform_0(%arg0: i32) -> (i32, i32, i32) {
    %c0_i32 = arith.constant 0 : i32
    %c0_i32_0 = arith.constant 0 : i32
    %c0_i32_1 = arith.constant 0 : i32
    return %arg0, %c0_i32, %c0_i32_0 : i32, i32, i32
  }
  func.func @transform_1(%arg0: i32) -> (i32, i32) {
    %c0_i32 = arith.constant 0 : i32
    %c0_i32_0 = arith.constant 0 : i32
    %c0_i32_1 = arith.constant 0 : i32
    return %c0_i32, %c0_i32_0 : i32, i32
  }
  func.func @transform_2(%arg0: i32) -> (i32, i32) {
    %c0_i32 = arith.constant 0 : i32
    %c0_i32_0 = arith.constant 0 : i32
    %c0_i32_1 = arith.constant 0 : i32
    return %c0_i32, %c0_i32_0 : i32, i32
  }
  func.func @transform_3(%arg0: i32) -> (i32, i32, i32) {
    %c0_i32 = arith.constant 0 : i32
    %c0_i32_0 = arith.constant 0 : i32
    %c0_i32_1 = arith.constant 0 : i32
    return %arg0, %c0_i32, %c0_i32_0 : i32, i32, i32
  }
}

</mosaic_0001>

<llo_original>
// kernel: mul.23
$region0: #{mul.23}
  %s0 = inlined_call_operand.vmem [shape: f32[3,16], index: 0, kind: input, shape index: {}]
  %s1 = inlined_call_operand.vmem [shape: f32[48], index: 1, kind: output, shape index: {}]
  $region1: #{mul.23} parent=0
    #allocation0 [shape = 'u8[4096]{0}', space=vmem, size = 0x1000, scoped, tag = 'scoped mem for output reshape']
    #allocation1 [shape = 'u8[4096]{0}', space=vmem, size = 0x1000, scoped, tag = 'scoped mem for input reshape']
    %s3 = sshllo.u32 0, 4
    %v4 = vld [vmem:[%s0] sm:%s3]
    %5 = vst [vmem:[#allocation1] sm:%s3] %v4
    %v6 = vld [vmem:[#allocation1] sm:$0x1]
    %vm7 = vcmask 130048
    %8 = vst.msk [vmem:[#allocation0] sm:$0x1] %vm7, %v6
    %s9 = scalar_lea.vmem [#allocation1], 2
    %v10 = vld [vmem:[%s9] sm:$0x1]
    %11 = vrot.lane.b32.xlu0 %v10, 32
    %v12 = vpop.permute.xlu0 %11
    %vm13 = vcmask 392448
    %14 = vst.msk [vmem:[#allocation0] sm:$0x1] %vm13, %v12
    %s15 = scalar_lea.vmem [#allocation1], 1
    %v16 = vld [vmem:[%s15] sm:$0x1]
    %17 = vrot.lane.b32.xlu0 %v16, 16
    %v18 = vpop.permute.xlu0 %17
    %vm19 = vcmask 261248
    %20 = vst.msk [vmem:[#allocation0] sm:$0x1] %vm19, %v18
    %s22 = sshllo.u32 0, 1
    %v24 = vld [vmem:[#allocation0] sm:%s22]
    %s25 = sshllo.u32 0, 1
    %26 = vst [vmem:[%s1] sm:%s25] %v24

// kernel: video_semantic_segmentor_forward.2
$region0: #{video_semantic_segmentor_forward.2}
  #allocation0 [shape = 'u32[]', space=smem, size = 0x4, offset = 0x4, fixed_abs, tag = 'smem constant byte address 0x4 - core index']
  #allocation1 [shape = 'u32[144,128]{1,0:T(1,128)}', space=vmem, size = 0x12000, scoped, tag = 'internal scratch']
  %s0 = inlined_call_operand.vmem [shape: bf16[128,48], index: 0, kind: input, shape index: {}]
  %s1 = inlined_call_operand.vmem [shape: bf16[48,128], index: 1, kind: input, shape index: {}]
  %s2 = inlined_call_operand.vmem [shape: f32[1,128], index: 2, kind: input, shape index: {}]
  %s3 = inlined_call_operand.vmem [shape: bf16[128,8], index: 3, kind: input, shape index: {}]
  %s4 = inlined_call_operand.vmem [shape: f32[1,8], index: 4, kind: input, shape index: {}]
  %s5 = inlined_call_operand.vmem [shape: f32[128,8], index: 5, kind: output, shape index: {}]
  %s6 = sld [smem:[#allocation0]]
  $region30: #{video_semantic_segmentor_forward.2} parent=0
    _
  %s8 = ssub.s32 1, %s6
  %s9 = scalar_select 0, %s8, %s6
  // Predicated region
  $region2: #{video_semantic_segmentor_forward.2} parent=0 // pred_check
    _
  $region3: #{video_semantic_segmentor_forward.2} parent=0 // pred_check_branch
    %11 = sbr.rel (0) target = $region5
  $region4: #{video_semantic_segmentor_forward.2} parent=0 // pred_region
    _
  $region5: #{video_semantic_segmentor_forward.2} parent=0 // pred_fallthru
    _
  // Predicated region
  $region6: #{video_semantic_segmentor_forward.2} parent=0 // pred_check
    _
  $region7: #{video_semantic_segmentor_forward.2} parent=0 // pred_check_branch
    %13 = sbr.rel (0) target = $region9
  $region8: #{video_semantic_segmentor_forward.2} parent=0 // pred_region
    _
  $region9: #{video_semantic_segmentor_forward.2} parent=0 // pred_fallthru
    _
  // Predicated region
  $region10: #{video_semantic_segmentor_forward.2} parent=0 // pred_check
    _
  $region11: #{video_semantic_segmentor_forward.2} parent=0 // pred_check_branch
    %15 = sbr.rel (0) target = $region13
  $region12: #{video_semantic_segmentor_forward.2} parent=0 // pred_region
    _
  $region13: #{video_semantic_segmentor_forward.2} parent=0 // pred_fallthru
    _
  // Predicated region
  $region14: #{video_semantic_segmentor_forward.2} parent=0 // pred_check
    _
  $region15: #{video_semantic_segmentor_forward.2} parent=0 // pred_check_branch
    %17 = sbr.rel (0) target = $region17
  $region16: #{video_semantic_segmentor_forward.2} parent=0 // pred_region
    _
  $region17: #{video_semantic_segmentor_forward.2} parent=0 // pred_fallthru
    _
  // Predicated region
  $region18: #{video_semantic_segmentor_forward.2} parent=0 // pred_check
    _
  $region19: #{video_semantic_segmentor_forward.2} parent=0 // pred_check_branch
    %19 = sbr.rel (0) target = $region21
  $region20: #{video_semantic_segmentor_forward.2} parent=0 // pred_region
    _
  $region21: #{video_semantic_segmentor_forward.2} parent=0 // pred_fallthru
    _
  %v21 = vld [vmem:[%s0] sm:$0xf]
  %v22 = vld [vmem:[%s0 + $0x4] sm:$0xf]
  %v23 = vld [vmem:[%s0 + $0x8] sm:$0xf]
  %v24 = vld [vmem:[%s0 + $0xc] sm:$0xf]
  %v25 = vld [vmem:[%s0 + $0x10] sm:$0xf]
  %v26 = vld [vmem:[%s0 + $0x14] sm:$0xf]
  %v27 = vld [vmem:[%s0 + $0x18] sm:$0xf]
  %v28 = vld [vmem:[%s0 + $0x1c] sm:$0xf]
  %v29 = vld [vmem:[%s0 + $0x20] sm:$0xf]
  %v30 = vld [vmem:[%s0 + $0x24] sm:$0xf]
  %v31 = vld [vmem:[%s0 + $0x28] sm:$0xf]
  %v32 = vld [vmem:[%s0 + $0x2c] sm:$0xf]
  %v33 = vld [vmem:[%s0 + $0x30] sm:$0xf]
  %v34 = vld [vmem:[%s0 + $0x34] sm:$0xf]
  %v35 = vld [vmem:[%s0 + $0x38] sm:$0xf]
  %v36 = vld [vmem:[%s0 + $0x3c] sm:$0xf]
  %v37 = vld [vmem:[%s1] sm:$0xf]
  %v38 = vld [vmem:[%s1 + $0x4] sm:$0xf]
  %v39 = vld [vmem:[%s1 + $0x8] sm:$0xf]
  %v40 = vld [vmem:[%s1 + $0xc] sm:$0xf]
  %v41 = vld [vmem:[%s1 + $0x10] sm:$0xf]
  %v42 = vld [vmem:[%s1 + $0x14] sm:$0xf]
  %v43 = vld [vmem:[%s2] sm:$0x1]
  %v45 = vlaneseq
  %v46 = vshrl.u32 %v45, 7
  %v47 = vsub.s32 0, %v46
  %v48 = vrot.slane %v43, %v47
  %v66 = vunpack.c.l.b16 %v21
  %v67 = vunpack.c.l.b16 %v22
  %v68 = vunpack.c.l.b16 %v23
  %v69 = vunpack.c.l.b16 %v24
  %v70 = vunpack.c.l.b16 %v25
  %v71 = vunpack.c.l.b16 %v26
  %v72 = vunpack.c.l.b16 %v27
  %v73 = vunpack.c.l.b16 %v28
  %v74 = vunpack.c.l.b16 %v29
  %v75 = vunpack.c.l.b16 %v30
  %v76 = vunpack.c.l.b16 %v31
  %v77 = vunpack.c.l.b16 %v32
  %v78 = vunpack.c.l.b16 %v33
  %v79 = vunpack.c.l.b16 %v34
  %v80 = vunpack.c.l.b16 %v35
  %v81 = vunpack.c.l.b16 %v36
  %v82 = vpack.c.b16 %v67, %v66
  %v83 = vpack.c.b16 %v69, %v68
  %v84 = vpack.c.b16 %v71, %v70
  %v85 = vpack.c.b16 %v73, %v72
  %v86 = vpack.c.b16 %v75, %v74
  %v87 = vpack.c.b16 %v77, %v76
  %v88 = vpack.c.b16 %v79, %v78
  %v89 = vpack.c.b16 %v81, %v80
  %v96 = vunpack.c.l.b16 %v37
  %v97 = vunpack.c.l.b16 %v38
  %v98 = vunpack.c.l.b16 %v39
  %v99 = vunpack.c.l.b16 %v40
  %v100 = vunpack.c.l.b16 %v41
  %v101 = vunpack.c.l.b16 %v42
  %v102 = vpack.c.b16 %v97, %v96
  %v103 = vpack.c.b16 %v99, %v98
  %v104 = vpack.c.b16 %v101, %v100
  %vm108 = vcmask 392192
  %v110 = vsel %vm108, %v82, 0
  %v113 = vsel %vm108, %v83, 0
  %v116 = vsel %vm108, %v84, 0
  %v119 = vsel %vm108, %v85, 0
  %v122 = vsel %vm108, %v86, 0
  %v125 = vsel %vm108, %v87, 0
  %v128 = vsel %vm108, %v88, 0
  %v131 = vsel %vm108, %v89, 0
  %133 = vmatprep.subr.bf16.mxu0 0
  %134 = vmatpush1.bf16.msra.mxu0 %v102
  %135 = vmatprep.subr.bf16.mxu0 0
  %136 = vmatpush1.bf16.msra.mxu0 %v103
  %137 = vmatprep.subr.bf16.mxu0 0
  %138 = vmatpush1.bf16.msra.mxu0 %v104
  %139 = vmatprep.subr.bf16.mxu0 0
  %140 = vmatpush1.bf16.msra.mxu0 0
  %141 = vmatprep.subr.bf16.mxu0 0
  %142 = vmatpush1.bf16.msra.mxu0 0
  %143 = vmatprep.subr.bf16.mxu0 0
  %144 = vmatpush1.bf16.msra.mxu0 0
  %145 = vmatprep.subr.bf16.mxu0 0
  %146 = vmatpush1.bf16.msra.mxu0 0
  %147 = vmatprep.subr.bf16.mxu0 0
  %148 = vmatpush1.bf16.msra.mxu0 0
  %149 = vmatprep.subr.bf16.mxu0 0
  %150 = vmatpush1.bf16.msra.mxu0 0
  %151 = vmatprep.subr.bf16.mxu0 0
  %152 = vmatpush1.bf16.msra.mxu0 0
  %153 = vmatprep.subr.bf16.mxu0 0
  %154 = vmatpush1.bf16.msra.mxu0 0
  %155 = vmatprep.subr.bf16.mxu0 0
  %156 = vmatpush1.bf16.msra.mxu0 0
  %157 = vmatprep.subr.bf16.mxu0 0
  %158 = vmatpush1.bf16.msra.mxu0 0
  %159 = vmatprep.subr.bf16.mxu0 0
  %160 = vmatpush1.bf16.msra.mxu0 0
  %161 = vmatprep.subr.bf16.mxu0 0
  %162 = vmatpush1.bf16.msra.mxu0 0
  %163 = vmatprep.subr.bf16.mxu0 0
  %164 = vmatpush1.bf16.msra.mxu0 0
  %165 = vmatprep.mubr.bf16.mxu0 0
  %166 = vmatmul.mubr.bf16.gmra.mrb[0].mxu0 %v110
  %v167 = vpop.f32.mrb[0].mxu0
  %v168 = vadd.f32 %v48, %v167
  %v169 = vpop.f32.mrb[0].mxu0
  %v170 = vpop.f32.mrb[0].mxu0
  %v171 = vadd.f32 %v48, %v170
  %v172 = vpop.f32.mrb[0].mxu0
  %173 = vmatprep.mubr.bf16.mxu0 0
  %174 = vmatmul.mubr.bf16.gmra.mrb[0].mxu0 %v113
  %v175 = vpop.f32.mrb[0].mxu0
  %v176 = vadd.f32 %v48, %v175
  %v177 = vpop.f32.mrb[0].mxu0
  %v178 = vpop.f32.mrb[0].mxu0
  %v179 = vadd.f32 %v48, %v178
  %v180 = vpop.f32.mrb[0].mxu0
  %181 = vmatprep.mubr.bf16.mxu0 0
  %182 = vmatmul.mubr.bf16.gmra.mrb[0].mxu0 %v116
  %v183 = vpop.f32.mrb[0].mxu0
  %v184 = vadd.f32 %v48, %v183
  %v185 = vpop.f32.mrb[0].mxu0
  %v186 = vpop.f32.mrb[0].mxu0
  %v187 = vadd.f32 %v48, %v186
  %v188 = vpop.f32.mrb[0].mxu0
  %189 = vmatprep.mubr.bf16.mxu0 0
  %190 = vmatmul.mubr.bf16.gmra.mrb[0].mxu0 %v119
  %v191 = vpop.f32.mrb[0].mxu0
  %v192 = vadd.f32 %v48, %v191
  %v193 = vpop.f32.mrb[0].mxu0
  %v194 = vpop.f32.mrb[0].mxu0
  %v195 = vadd.f32 %v48, %v194
  %v196 = vpop.f32.mrb[0].mxu0
  %197 = vmatprep.mubr.bf16.mxu0 0
  %198 = vmatmul.mubr.bf16.gmra.mrb[0].mxu0 %v122
  %v199 = vpop.f32.mrb[0].mxu0
  %v200 = vadd.f32 %v48, %v199
  %v201 = vpop.f32.mrb[0].mxu0
  %v202 = vpop.f32.mrb[0].mxu0
  %v203 = vadd.f32 %v48, %v202
  %v204 = vpop.f32.mrb[0].mxu0
  %205 = vmatprep.mubr.bf16.mxu0 0
  %206 = vmatmul.mubr.bf16.gmra.mrb[0].mxu0 %v125
  %v207 = vpop.f32.mrb[0].mxu0
  %v208 = vadd.f32 %v48, %v207
  %v209 = vpop.f32.mrb[0].mxu0
  %v210 = vpop.f32.mrb[0].mxu0
  %v211 = vadd.f32 %v48, %v210
  %v212 = vpop.f32.mrb[0].mxu0
  %213 = vmatprep.mubr.bf16.mxu0 0
  %214 = vmatmul.mubr.bf16.gmra.mrb[0].mxu0 %v128
  %v215 = vpop.f32.mrb[0].mxu0
  %v216 = vadd.f32 %v48, %v215
  %v217 = vpop.f32.mrb[0].mxu0
  %v218 = vpop.f32.mrb[0].mxu0
  %v219 = vadd.f32 %v48, %v218
  %v220 = vpop.f32.mrb[0].mxu0
  %221 = vmatprep.mubr.bf16.mxu0 0
  %222 = vmatmul.mubr.bf16.gmra.mrb[0].mxu0 %v131
  %v223 = vpop.f32.mrb[0].mxu0
  %v224 = vadd.f32 %v48, %v223
  %v225 = vpop.f32.mrb[0].mxu0
  %v226 = vpop.f32.mrb[0].mxu0
  %v227 = vadd.f32 %v48, %v226
  %v228 = vpop.f32.mrb[0].mxu0
  %229 = vdwg.mxu0
  %v230 = vmax.f32 %v168, 0.0
  %v231 = vmax.f32 %v171, 0.0
  %v232 = vmax.f32 %v176, 0.0
  %v233 = vmax.f32 %v179, 0.0
  %v234 = vmax.f32 %v184, 0.0
  %v235 = vmax.f32 %v187, 0.0
  %v236 = vmax.f32 %v192, 0.0
  %v237 = vmax.f32 %v195, 0.0
  %v238 = vmax.f32 %v200, 0.0
  %v239 = vmax.f32 %v203, 0.0
  %v240 = vmax.f32 %v208, 0.0
  %v241 = vmax.f32 %v211, 0.0
  %v242 = vmax.f32 %v216, 0.0
  %v243 = vmax.f32 %v219, 0.0
  %v244 = vmax.f32 %v224, 0.0
  %v245 = vmax.f32 %v227, 0.0
  %v246 = vpack.c.bf16 %v231, %v230
  %v247 = vpack.c.bf16 %v233, %v232
  %v248 = vpack.c.bf16 %v235, %v234
  %v249 = vpack.c.bf16 %v237, %v236
  %v250 = vpack.c.bf16 %v239, %v238
  %v251 = vpack.c.bf16 %v241, %v240
  %v252 = vpack.c.bf16 %v243, %v242
  %v253 = vpack.c.bf16 %v245, %v244
  %v254 = vld [vmem:[%s3] sm:$0xf]
  %v255 = vld [vmem:[%s3 + $0x4] sm:$0xf]
  %v256 = vld [vmem:[%s3 + $0x8] sm:$0xf]
  %v257 = vld [vmem:[%s3 + $0xc] sm:$0xf]
  %v258 = vld [vmem:[%s3 + $0x10] sm:$0xf]
  %v259 = vld [vmem:[%s3 + $0x14] sm:$0xf]
  %v260 = vld [vmem:[%s3 + $0x18] sm:$0xf]
  %v261 = vld [vmem:[%s3 + $0x1c] sm:$0xf]
  %v262 = vld [vmem:[%s3 + $0x20] sm:$0xf]
  %v263 = vld [vmem:[%s3 + $0x24] sm:$0xf]
  %v264 = vld [vmem:[%s3 + $0x28] sm:$0xf]
  %v265 = vld [vmem:[%s3 + $0x2c] sm:$0xf]
  %v266 = vld [vmem:[%s3 + $0x30] sm:$0xf]
  %v267 = vld [vmem:[%s3 + $0x34] sm:$0xf]
  %v268 = vld [vmem:[%s3 + $0x38] sm:$0xf]
  %v269 = vld [vmem:[%s3 + $0x3c] sm:$0xf]
  %v270 = vld [vmem:[%s4] sm:$0x1]
  %v272 = vlaneseq
  %v273 = vshrl.u32 %v272, 7
  %v274 = vsub.s32 0, %v273
  %v275 = vrot.slane %v270, %v274
  %v293 = vunpack.c.l.b16 %v254
  %v294 = vunpack.c.l.b16 %v255
  %v295 = vunpack.c.l.b16 %v256
  %v296 = vunpack.c.l.b16 %v257
  %v297 = vunpack.c.l.b16 %v258
  %v298 = vunpack.c.l.b16 %v259
  %v299 = vunpack.c.l.b16 %v260
  %v300 = vunpack.c.l.b16 %v261
  %v301 = vunpack.c.l.b16 %v262
  %v302 = vunpack.c.l.b16 %v263
  %v303 = vunpack.c.l.b16 %v264
  %v304 = vunpack.c.l.b16 %v265
  %v305 = vunpack.c.l.b16 %v266
  %v306 = vunpack.c.l.b16 %v267
  %v307 = vunpack.c.l.b16 %v268
  %v308 = vunpack.c.l.b16 %v269
  %v309 = vpack.c.b16 %v294, %v293
  %v310 = vpack.c.b16 %v296, %v295
  %v311 = vpack.c.b16 %v298, %v297
  %v312 = vpack.c.b16 %v300, %v299
  %v313 = vpack.c.b16 %v302, %v301
  %v314 = vpack.c.b16 %v304, %v303
  %v315 = vpack.c.b16 %v306, %v305
  %v316 = vpack.c.b16 %v308, %v307
  %325 = vmatprep.subr.bf16.mxu0 0
  %326 = vmatpush1.bf16.msra.mxu0 %v309
  %327 = vmatprep.subr.bf16.mxu0 0
  %328 = vmatpush1.bf16.msra.mxu0 %v310
  %329 = vmatprep.subr.bf16.mxu0 0
  %330 = vmatpush1.bf16.msra.mxu0 %v311
  %331 = vmatprep.subr.bf16.mxu0 0
  %332 = vmatpush1.bf16.msra.mxu0 %v312
  %333 = vmatprep.subr.bf16.mxu0 0
  %334 = vmatpush1.bf16.msra.mxu0 %v313
  %335 = vmatprep.subr.bf16.mxu0 0
  %336 = vmatpush1.bf16.msra.mxu0 %v314
  %337 = vmatprep.subr.bf16.mxu0 0
  %338 = vmatpush1.bf16.msra.mxu0 %v315
  %339 = vmatprep.subr.bf16.mxu0 0
  %340 = vmatpush1.bf16.msra.mxu0 %v316
  %341 = vmatprep.subr.bf16.mxu0 0
  %342 = vmatpush1.bf16.msra.mxu0 0
  %343 = vmatprep.subr.bf16.mxu0 0
  %344 = vmatpush1.bf16.msra.mxu0 0
  %345 = vmatprep.subr.bf16.mxu0 0
  %346 = vmatpush1.bf16.msra.mxu0 0
  %347 = vmatprep.subr.bf16.mxu0 0
  %348 = vmatpush1.bf16.msra.mxu0 0
  %349 = vmatprep.subr.bf16.mxu0 0
  %350 = vmatpush1.bf16.msra.mxu0 0
  %351 = vmatprep.subr.bf16.mxu0 0
  %352 = vmatpush1.bf16.msra.mxu0 0
  %353 = vmatprep.subr.bf16.mxu0 0
  %354 = vmatpush1.bf16.msra.mxu0 0
  %355 = vmatprep.subr.bf16.mxu0 0
  %356 = vmatpush1.bf16.msra.mxu0 0
  %357 = vmatprep.mubr.bf16.mxu0 0
  %358 = vmatmul.mubr.bf16.gmra.mrb[0].mxu0 %v246
  %v359 = vpop.f32.mrb[0].mxu0
  %v360 = vadd.f32 %v275, %v359
  %v361 = vpop.f32.mrb[0].mxu0
  %v362 = vpop.f32.mrb[0].mxu0
  %v363 = vadd.f32 %v275, %v362
  %v364 = vpop.f32.mrb[0].mxu0
  %365 = vmatprep.mubr.bf16.mxu0 0
  %366 = vmatmul.mubr.bf16.gmra.mrb[0].mxu0 %v247
  %v367 = vpop.f32.mrb[0].mxu0
  %v368 = vadd.f32 %v275, %v367
  %v369 = vpop.f32.mrb[0].mxu0
  %v370 = vpop.f32.mrb[0].mxu0
  %v371 = vadd.f32 %v275, %v370
  %v372 = vpop.f32.mrb[0].mxu0
  %373 = vmatprep.mubr.bf16.mxu0 0
  %374 = vmatmul.mubr.bf16.gmra.mrb[0].mxu0 %v248
  %v375 = vpop.f32.mrb[0].mxu0
  %v376 = vadd.f32 %v275, %v375
  %v377 = vpop.f32.mrb[0].mxu0
  %v378 = vpop.f32.mrb[0].mxu0
  %v379 = vadd.f32 %v275, %v378
  %v380 = vpop.f32.mrb[0].mxu0
  %381 = vmatprep.mubr.bf16.mxu0 0
  %382 = vmatmul.mubr.bf16.gmra.mrb[0].mxu0 %v249
  %v383 = vpop.f32.mrb[0].mxu0
  %v384 = vadd.f32 %v275, %v383
  %v385 = vpop.f32.mrb[0].mxu0
  %v386 = vpop.f32.mrb[0].mxu0
  %v387 = vadd.f32 %v275, %v386
  %v388 = vpop.f32.mrb[0].mxu0
  %389 = vmatprep.mubr.bf16.mxu0 0
  %390 = vmatmul.mubr.bf16.gmra.mrb[0].mxu0 %v250
  %v391 = vpop.f32.mrb[0].mxu0
  %v392 = vadd.f32 %v275, %v391
  %v393 = vpop.f32.mrb[0].mxu0
  %v394 = vpop.f32.mrb[0].mxu0
  %v395 = vadd.f32 %v275, %v394
  %v396 = vpop.f32.mrb[0].mxu0
  %397 = vmatprep.mubr.bf16.mxu0 0
  %398 = vmatmul.mubr.bf16.gmra.mrb[0].mxu0 %v251
  %v399 = vpop.f32.mrb[0].mxu0
  %v400 = vadd.f32 %v275, %v399
  %v401 = vpop.f32.mrb[0].mxu0
  %v402 = vpop.f32.mrb[0].mxu0
  %v403 = vadd.f32 %v275, %v402
  %v404 = vpop.f32.mrb[0].mxu0
  %405 = vmatprep.mubr.bf16.mxu0 0
  %406 = vmatmul.mubr.bf16.gmra.mrb[0].mxu0 %v252
  %v407 = vpop.f32.mrb[0].mxu0
  %v408 = vadd.f32 %v275, %v407
  %v409 = vpop.f32.mrb[0].mxu0
  %v410 = vpop.f32.mrb[0].mxu0
  %v411 = vadd.f32 %v275, %v410
  %v412 = vpop.f32.mrb[0].mxu0
  %413 = vmatprep.mubr.bf16.mxu0 0
  %414 = vmatmul.mubr.bf16.gmra.mrb[0].mxu0 %v253
  %v415 = vpop.f32.mrb[0].mxu0
  %v416 = vadd.f32 %v275, %v415
  %v417 = vpop.f32.mrb[0].mxu0
  %v418 = vpop.f32.mrb[0].mxu0
  %v419 = vadd.f32 %v275, %v418
  %v420 = vpop.f32.mrb[0].mxu0
  %421 = vdwg.mxu0
  %vm422 = vcmask 64512
  %423 = vst.msk [vmem:[%s5] sm:$0xff] %vm422, %v360
  %424 = vst.msk [vmem:[%s5 + $0x8] sm:$0xff] %vm422, %v363
  %425 = vst.msk [vmem:[%s5 + $0x10] sm:$0xff] %vm422, %v368
  %426 = vst.msk [vmem:[%s5 + $0x18] sm:$0xff] %vm422, %v371
  %427 = vst.msk [vmem:[%s5 + $0x20] sm:$0xff] %vm422, %v376
  %428 = vst.msk [vmem:[%s5 + $0x28] sm:$0xff] %vm422, %v379
  %429 = vst.msk [vmem:[%s5 + $0x30] sm:$0xff] %vm422, %v384
  %430 = vst.msk [vmem:[%s5 + $0x38] sm:$0xff] %vm422, %v387
  %431 = vst.msk [vmem:[%s5 + $0x40] sm:$0xff] %vm422, %v392
  %432 = vst.msk [vmem:[%s5 + $0x48] sm:$0xff] %vm422, %v395
  %433 = vst.msk [vmem:[%s5 + $0x50] sm:$0xff] %vm422, %v400
  %434 = vst.msk [vmem:[%s5 + $0x58] sm:$0xff] %vm422, %v403
  %435 = vst.msk [vmem:[%s5 + $0x60] sm:$0xff] %vm422, %v408
  %436 = vst.msk [vmem:[%s5 + $0x68] sm:$0xff] %vm422, %v411
  %437 = vst.msk [vmem:[%s5 + $0x70] sm:$0xff] %vm422, %v416
  %438 = vst.msk [vmem:[%s5 + $0x78] sm:$0xff] %vm422, %v419
  // Predicated region
  $region22: #{video_semantic_segmentor_forward.2} parent=0 // pred_check
    _
  $region23: #{video_semantic_segmentor_forward.2} parent=0 // pred_check_branch
    %440 = sbr.rel (0) target = $region25
  $region24: #{video_semantic_segmentor_forward.2} parent=0 // pred_region
    _
  $region25: #{video_semantic_segmentor_forward.2} parent=0 // pred_fallthru
    _
  // Predicated region
  $region26: #{video_semantic_segmentor_forward.2} parent=0 // pred_check
    _
  $region27: #{video_semantic_segmentor_forward.2} parent=0 // pred_check_branch
    %442 = sbr.rel (0) target = $region29
  $region28: #{video_semantic_segmentor_forward.2} parent=0 // pred_region
    _
  $region29: #{video_semantic_segmentor_forward.2} parent=0 // pred_fallthru
    _

// kernel: video_semantic_segmentor_forward.3
$region0: #{video_semantic_segmentor_forward.3}
  #allocation0 [shape = 'u32[]', space=smem, size = 0x4, offset = 0x4, fixed_abs, tag = 'smem constant byte address 0x4 - core index']
  #allocation1 [shape = 'u32[144,128]{1,0:T(1,128)}', space=vmem, size = 0x12000, scoped, tag = 'internal scratch']
  %s0 = inlined_call_operand.vmem [shape: f32[16,8,8], index: 0, kind: input, shape index: {}]
  %s1 = inlined_call_operand.vmem [shape: f32[8,32], index: 1, kind: input, shape index: {}]
  %s2 = inlined_call_operand.vmem [shape: f32[32,8], index: 2, kind: input, shape index: {}]
  %s3 = inlined_call_operand.vmem [shape: f32[16,32,32], index: 3, kind: output, shape index: {}]
  %s4 = sld [smem:[#allocation0]]
  $region45: #{video_semantic_segmentor_forward.3} parent=0
    _
  %s6 = ssub.s32 1, %s4
  %s7 = scalar_select 0, %s6, %s4
  loop: start=0, step=1, limit=18
  $region2: #{video_semantic_segmentor_forward.3} parent=0 // loop_pre_header
    _
  $region3: #{video_semantic_segmentor_forward.3} parent=0 // loop_header
    %s9 = sphi 0, %s13
    %p10 = scmp.ge.s32.totalorder %s9, 18
    %s19 = sphi 0, %s21
    %s22 = sphi 0, %s19
    %s23 = sphi 0, %s22
    %s39 = sphi 0, %s23
    %s43 = sphi 0, %s43
    %s45 = sphi 0, %s43
    %s46 = sphi 0, %s45
    %s60 = sphi 0, %s46
    %s64 = sphi 0, %s64
    %s66 = sphi 0, %s64
    %s67 = sphi 0, %s66
    %s81 = sphi 0, %s67
    %s87 = sphi 0, %s89
    %s90 = sphi 0, %s87
    %s91 = sphi 0, %s90
    %s107 = sphi 0, %s91
  $region4: #{video_semantic_segmentor_forward.3} parent=0 // loop_header_branch
    %12 = sbr.rel (%p10) target = $region8
  $region5: #{video_semantic_segmentor_forward.3} parent=0 // loop_body
    %s14 = ssub.s32 %s9, 1
    %s15 = ssub.s32 %s9, 2
    %s16 = sadd.s32 %s9, 1
    %s17 = ssub.s32 %s9, %s16
    %p18 = scmp.eq.s32.totalorder %s17, 0
    %s20 = sadd.s32 %s19, 1
    %s21 = scalar_select %p18, %s19, %s20
    %p24 = pneg %p18
    %p25 = scmp.eq.s32.totalorder %s9, 15
    %p26 = por %p24, %p25
    %p27 = scmp.ne.s32.totalorder %s19, %s22
    %p28 = scmp.eq.s32.totalorder %s9, 0
    %p29 = por %p27, %p28
    %p30 = scmp.ne.s32.totalorder %s19, %s22
    %p31 = scmp.eq.s32.totalorder %s14, 15
    %p32 = por %p30, %p31
    %p33 = scmp.ne.s32.totalorder %s22, %s23
    %p34 = scmp.eq.s32.totalorder %s14, 0
    %p35 = por %p33, %p34
    %p36 = scmp.ne.s32.totalorder %s22, %s23
    %p37 = scmp.eq.s32.totalorder %s15, 15
    %p38 = por %p36, %p37
    %p40 = scmp.ne.s32.totalorder %s23, %s39
    %p41 = scmp.eq.s32.totalorder %s15, 0
    %p42 = por %p40, %p41
    %s44 = sadd.s32 %s43, 1
    %p47 = scmp.eq.s32.totalorder %s9, 15
    %p48 = scmp.ne.s32.totalorder %s43, %s45
    %p49 = scmp.eq.s32.totalorder %s9, 0
    %p50 = por %p48, %p49
    %p51 = scmp.ne.s32.totalorder %s43, %s45
    %p52 = scmp.eq.s32.totalorder %s14, 15
    %p53 = por %p51, %p52
    %p54 = scmp.ne.s32.totalorder %s45, %s46
    %p55 = scmp.eq.s32.totalorder %s14, 0
    %p56 = por %p54, %p55
    %p57 = scmp.ne.s32.totalorder %s45, %s46
    %p58 = scmp.eq.s32.totalorder %s15, 15
    %p59 = por %p57, %p58
    %p61 = scmp.ne.s32.totalorder %s46, %s60
    %p62 = scmp.eq.s32.totalorder %s15, 0
    %p63 = por %p61, %p62
    %s65 = sadd.s32 %s64, 1
    %p68 = scmp.eq.s32.totalorder %s9, 15
    %p69 = scmp.ne.s32.totalorder %s64, %s66
    %p70 = scmp.eq.s32.totalorder %s9, 0
    %p71 = por %p69, %p70
    %p72 = scmp.ne.s32.totalorder %s64, %s66
    %p73 = scmp.eq.s32.totalorder %s14, 15
    %p74 = por %p72, %p73
    %p75 = scmp.ne.s32.totalorder %s66, %s67
    %p76 = scmp.eq.s32.totalorder %s14, 0
    %p77 = por %p75, %p76
    %p78 = scmp.ne.s32.totalorder %s66, %s67
    %p79 = scmp.eq.s32.totalorder %s15, 15
    %p80 = por %p78, %p79
    %p82 = scmp.ne.s32.totalorder %s67, %s81
    %p83 = scmp.eq.s32.totalorder %s15, 0
    %p84 = por %p82, %p83
    %s85 = ssub.s32 %s9, %s16
    %p86 = scmp.eq.s32.totalorder %s85, 0
    %s88 = sadd.s32 %s87, 1
    %s89 = scalar_select %p86, %s87, %s88
    %p92 = pneg %p86
    %p93 = scmp.eq.s32.totalorder %s9, 15
    %p94 = por %p92, %p93
    %p95 = scmp.ne.s32.totalorder %s87, %s90
    %p96 = scmp.eq.s32.totalorder %s9, 0
    %p97 = por %p95, %p96
    %p98 = scmp.ne.s32.totalorder %s87, %s90
    %p99 = scmp.eq.s32.totalorder %s14, 15
    %p100 = por %p98, %p99
    %p101 = scmp.ne.s32.totalorder %s90, %s91
    %p102 = scmp.eq.s32.totalorder %s14, 0
    %p103 = por %p101, %p102
    %p104 = scmp.ne.s32.totalorder %s90, %s91
    %p105 = scmp.eq.s32.totalorder %s15, 15
    %p106 = por %p104, %p105
    %p108 = scmp.ne.s32.totalorder %s91, %s107
    %p109 = scmp.eq.s32.totalorder %s15, 0
    %p110 = por %p108, %p109
    %p111 = scmp.le.s32.totalorder 1, %s9
    %p112 = scmp.lt.s32.totalorder %s9, 17
    %p113 = pnand %p111, %p112
    %p114 = pneg %p113
    // Predicated region
    $region9: #{video_semantic_segmentor_forward.3} parent=5 // pred_check
      _
    $region10: #{video_semantic_segmentor_forward.3} parent=5 // pred_check_branch
      %116 = sbr.rel (%p113) target = $region12
    $region11: #{video_semantic_segmentor_forward.3} parent=5 // pred_region
      %s117 = ssub.s32 %s9, 1
      // Predicated region
      $region13: #{video_semantic_segmentor_forward.3} parent=11 // pred_check
        %p118 = pneg %p56
      $region14: #{video_semantic_segmentor_forward.3} parent=11 // pred_check_branch
        %120 = sbr.rel (%p118) target = $region16
      $region15: #{video_semantic_segmentor_forward.3} parent=11 // pred_region
        _
      $region16: #{video_semantic_segmentor_forward.3} parent=11 // pred_fallthru
        _
      // Predicated region
      $region17: #{video_semantic_segmentor_forward.3} parent=11 // pred_check
        %p121 = pneg %p77
      $region18: #{video_semantic_segmentor_forward.3} parent=11 // pred_check_branch
        %123 = sbr.rel (%p121) target = $region20
      $region19: #{video_semantic_segmentor_forward.3} parent=11 // pred_region
        _
      $region20: #{video_semantic_segmentor_forward.3} parent=11 // pred_fallthru
        _
    $region12: #{video_semantic_segmentor_forward.3} parent=5 // pred_fallthru
      _
    %p124 = scmp.lt.s32.totalorder %s9, 16
    // Predicated region
    $region21: #{video_semantic_segmentor_forward.3} parent=5 // pred_check
      %p125 = pneg %p124
    $region22: #{video_semantic_segmentor_forward.3} parent=5 // pred_check_branch
      %127 = sbr.rel (%p125) target = $region24
    $region23: #{video_semantic_segmentor_forward.3} parent=5 // pred_region
      // Predicated region
      $region25: #{video_semantic_segmentor_forward.3} parent=23 // pred_check
        %p128 = pneg %p29
      $region26: #{video_semantic_segmentor_forward.3} parent=23 // pred_check_branch
        %130 = sbr.rel (%p128) target = $region28
      $region27: #{video_semantic_segmentor_forward.3} parent=23 // pred_region
        %p131 = scmp.lt.s32.totalorder %s9, 15
        %s132 = scalar_select %p131, %s9, 15
        %s133 = smul.addr %s132, 8
        %s134 = scalar_lea.vmem %s0, %s133
      $region28: #{video_semantic_segmentor_forward.3} parent=23 // pred_fallthru
        _
    $region24: #{video_semantic_segmentor_forward.3} parent=5 // pred_fallthru
      _
    %p135 = scmp.le.s32.totalorder 1, %s9
    %p136 = scmp.lt.s32.totalorder %s9, 17
    %p137 = pnand %p135, %p136
    %p138 = pneg %p137
    // Predicated region
    $region29: #{video_semantic_segmentor_forward.3} parent=5 // pred_check
      _
    $region30: #{video_semantic_segmentor_forward.3} parent=5 // pred_check_branch
      %140 = sbr.rel (%p137) target = $region32
    $region31: #{video_semantic_segmentor_forward.3} parent=5 // pred_region
      %s141 = ssub.s32 %s9, 1
      %p142 = scmp.lt.s32.totalorder %s14, 15
      %s143 = scalar_select %p142, %s14, 15
      %s144 = smul.addr %s143, 8
      %s145 = scalar_lea.vmem %s0, %s144
      %p146 = pneg %p35
      %p147 = pneg %p32
      %p148 = pneg %p56
      %p149 = pneg %p53
      %p150 = pneg %p77
      %p151 = pneg %p74
      %p152 = pneg %p103
      %p153 = pneg %p100
      %p154 = scmp.lt.s32.totalorder %s14, 15
      %s155 = scalar_select %p154, %s14, 15
      %s156 = smul.addr %s155, 4
      %s157 = smul.addr %s156, 8
      %s158 = scalar_lea.vmem %s3, %s157
      %p159 = scmp.lt.s32.totalorder %s14, 15
      %s160 = scalar_select %p159, %s14, 15
      %s161 = smul.addr %s160, 8
      %s162 = scalar_lea.vmem %s0, %s161
      %p163 = scmp.lt.s32.totalorder %s14, 15
      %s164 = scalar_select %p163, %s14, 15
      %s165 = smul.addr %s164, 4
      %s166 = smul.addr %s165, 8
      %s167 = scalar_lea.vmem %s3, %s166
      %v168 = vld [vmem:[%s162] sm:$0xff]
      %v169 = vld [vmem:[%s1] sm:$0xff]
      %vm170 = vcmask 64512
      %v172 = vsel %vm170, %v168, 0
      %174 = vmatprep.subr.mxu0 0.0
      %175 = vmatpush1.msra.mxu0 %v169
      %176 = vmatprep.subr.mxu0 0.0
      %177 = vmatpush1.msra.mxu0 0.0
      %178 = vmatprep.subr.mxu0 0.0
      %179 = vmatpush1.msra.mxu0 0.0
      %180 = vmatprep.subr.mxu0 0.0
      %181 = vmatpush1.msra.mxu0 0.0
      %182 = vmatprep.subr.mxu0 0.0
      %183 = vmatpush1.msra.mxu0 0.0
      %184 = vmatprep.subr.mxu0 0.0
      %185 = vmatpush1.msra.mxu0 0.0
      %186 = vmatprep.subr.mxu0 0.0
      %187 = vmatpush1.msra.mxu0 0.0
      %188 = vmatprep.subr.mxu0 0.0
      %189 = vmatpush1.msra.mxu0 0.0
      %190 = vmatprep.subr.mxu0 0.0
      %191 = vmatpush1.msra.mxu0 0.0
      %192 = vmatprep.subr.mxu0 0.0
      %193 = vmatpush1.msra.mxu0 0.0
      %194 = vmatprep.subr.mxu0 0.0
      %195 = vmatpush1.msra.mxu0 0.0
      %196 = vmatprep.subr.mxu0 0.0
      %197 = vmatpush1.msra.mxu0 0.0
      %198 = vmatprep.subr.mxu0 0.0
      %199 = vmatpush1.msra.mxu0 0.0
      %200 = vmatprep.subr.mxu0 0.0
      %201 = vmatpush1.msra.mxu0 0.0
      %202 = vmatprep.subr.mxu0 0.0
      %203 = vmatpush1.msra.mxu0 0.0
      %204 = vmatprep.subr.mxu0 0.0
      %205 = vmatpush1.msra.mxu0 0.0
      %206 = vmatprep.subr.mxu0 0.0
      %207 = vmatpush1.msra.mxu0 0.0
      %208 = vmatprep.subr.mxu0 0.0
      %209 = vmatpush1.msra.mxu0 0.0
      %210 = vmatprep.subr.mxu0 0.0
      %211 = vmatpush1.msra.mxu0 0.0
      %212 = vmatprep.subr.mxu0 0.0
      %213 = vmatpush1.msra.mxu0 0.0
      %214 = vmatprep.subr.mxu0 0.0
      %215 = vmatpush1.msra.mxu0 0.0
      %216 = vmatprep.subr.mxu0 0.0
      %217 = vmatpush1.msra.mxu0 0.0
      %218 = vmatprep.subr.mxu0 0.0
      %219 = vmatpush1.msra.mxu0 0.0
      %220 = vmatprep.subr.mxu0 0.0
      %221 = vmatpush1.msra.mxu0 0.0
      %222 = vmatprep.subr.mxu0 0.0
      %223 = vmatpush1.msra.mxu0 0.0
      %224 = vmatprep.subr.mxu0 0.0
      %225 = vmatpush1.msra.mxu0 0.0
      %226 = vmatprep.subr.mxu0 0.0
      %227 = vmatpush1.msra.mxu0 0.0
      %228 = vmatprep.subr.mxu0 0.0
      %229 = vmatpush1.msra.mxu0 0.0
      %230 = vmatprep.subr.mxu0 0.0
      %231 = vmatpush1.msra.mxu0 0.0
      %232 = vmatprep.subr.mxu0 0.0
      %233 = vmatpush1.msra.mxu0 0.0
      %234 = vmatprep.subr.mxu0 0.0
      %235 = vmatpush1.msra.mxu0 0.0
      %236 = vmatprep.subr.mxu0 0.0
      %237 = vmatpush1.msra.mxu0 0.0
      %238 = vmatprep.mubr.f32.mxu0 0.0
      %239 = vmatmul.mubr.f32.gmra.mrb[0].mxu0 %v172
      %v240 = vpop.f32.mrb[0].mxu0
      %v241 = vadd.f32 0.0, %v240
      %v242 = vpop.f32.mrb[0].mxu0
      %243 = vdwg.mxu0
      %v244 = vld [vmem:[%s2] sm:$0xff]
      %v245 = vld [vmem:[%s2 + $0x8] sm:$0xff]
      %v246 = vld [vmem:[%s2 + $0x10] sm:$0xff]
      %v247 = vld [vmem:[%s2 + $0x18] sm:$0xff]
      %v249 = vsel %vm170, %v244, 0
      %v252 = vsel %vm170, %v245, 0
      %v255 = vsel %vm170, %v246, 0
      %v258 = vsel %vm170, %v247, 0
      %260 = vmatprep.subr.mxu0 0.0
      %261 = vmatpush1.msra.mxu0 %v241
      %262 = vmatprep.subr.mxu0 0.0
      %263 = vmatpush1.msra.mxu0 0.0
      %264 = vmatprep.subr.mxu0 0.0
      %265 = vmatpush1.msra.mxu0 0.0
      %266 = vmatprep.subr.mxu0 0.0
      %267 = vmatpush1.msra.mxu0 0.0
      %268 = vmatprep.subr.mxu0 0.0
      %269 = vmatpush1.msra.mxu0 0.0
      %270 = vmatprep.subr.mxu0 0.0
      %271 = vmatpush1.msra.mxu0 0.0
      %272 = vmatprep.subr.mxu0 0.0
      %273 = vmatpush1.msra.mxu0 0.0
      %274 = vmatprep.subr.mxu0 0.0
      %275 = vmatpush1.msra.mxu0 0.0
      %276 = vmatprep.subr.mxu0 0.0
      %277 = vmatpush1.msra.mxu0 0.0
      %278 = vmatprep.subr.mxu0 0.0
      %279 = vmatpush1.msra.mxu0 0.0
      %280 = vmatprep.subr.mxu0 0.0
      %281 = vmatpush1.msra.mxu0 0.0
      %282 = vmatprep.subr.mxu0 0.0
      %283 = vmatpush1.msra.mxu0 0.0
      %284 = vmatprep.subr.mxu0 0.0
      %285 = vmatpush1.msra.mxu0 0.0
      %286 = vmatprep.subr.mxu0 0.0
      %287 = vmatpush1.msra.mxu0 0.0
      %288 = vmatprep.subr.mxu0 0.0
      %289 = vmatpush1.msra.mxu0 0.0
      %290 = vmatprep.subr.mxu0 0.0
      %291 = vmatpush1.msra.mxu0 0.0
      %292 = vmatprep.subr.mxu0 0.0
      %293 = vmatpush1.msra.mxu0 0.0
      %294 = vmatprep.subr.mxu0 0.0
      %295 = vmatpush1.msra.mxu0 0.0
      %296 = vmatprep.subr.mxu0 0.0
      %297 = vmatpush1.msra.mxu0 0.0
      %298 = vmatprep.subr.mxu0 0.0
      %299 = vmatpush1.msra.mxu0 0.0
      %300 = vmatprep.subr.mxu0 0.0
      %301 = vmatpush1.msra.mxu0 0.0
      %302 = vmatprep.subr.mxu0 0.0
      %303 = vmatpush1.msra.mxu0 0.0
      %304 = vmatprep.subr.mxu0 0.0
      %305 = vmatpush1.msra.mxu0 0.0
      %306 = vmatprep.subr.mxu0 0.0
      %307 = vmatpush1.msra.mxu0 0.0
      %308 = vmatprep.subr.mxu0 0.0
      %309 = vmatpush1.msra.mxu0 0.0
      %310 = vmatprep.subr.mxu0 0.0
      %311 = vmatpush1.msra.mxu0 0.0
      %312 = vmatprep.subr.mxu0 0.0
      %313 = vmatpush1.msra.mxu0 0.0
      %314 = vmatprep.subr.mxu0 0.0
      %315 = vmatpush1.msra.mxu0 0.0
      %316 = vmatprep.subr.mxu0 0.0
      %317 = vmatpush1.msra.mxu0 0.0
      %318 = vmatprep.subr.mxu0 0.0
      %319 = vmatpush1.msra.mxu0 0.0
      %320 = vmatprep.subr.mxu0 0.0
      %321 = vmatpush1.msra.mxu0 0.0
      %322 = vmatprep.subr.mxu0 0.0
      %323 = vmatpush1.msra.mxu0 0.0
      %324 = vmatprep.mubr.f32.mxu0 0.0
      %325 = vmatmul.mubr.f32.gmra.mrb[0].mxu0 %v249
      %v326 = vpop.f32.mrb[0].mxu0
      %v327 = vadd.f32 0.0, %v326
      %v328 = vpop.f32.mrb[0].mxu0
      %329 = vmatprep.mubr.f32.mxu0 0.0
      %330 = vmatmul.mubr.f32.gmra.mrb[0].mxu0 %v252
      %v331 = vpop.f32.mrb[0].mxu0
      %v332 = vadd.f32 0.0, %v331
      %v333 = vpop.f32.mrb[0].mxu0
      %334 = vmatprep.mubr.f32.mxu0 0.0
      %335 = vmatmul.mubr.f32.gmra.mrb[0].mxu0 %v255
      %v336 = vpop.f32.mrb[0].mxu0
      %v337 = vadd.f32 0.0, %v336
      %v338 = vpop.f32.mrb[0].mxu0
      %339 = vmatprep.mubr.f32.mxu0 0.0
      %340 = vmatmul.mubr.f32.gmra.mrb[0].mxu0 %v258
      %v341 = vpop.f32.mrb[0].mxu0
      %v342 = vadd.f32 0.0, %v341
      %v343 = vpop.f32.mrb[0].mxu0
      %344 = vdwg.mxu0
      %vm345 = vcmask 261120
      %346 = vst.msk [vmem:[%s167] sm:$0xff] %vm345, %v327
      %347 = vst.msk [vmem:[%s167 + $0x8] sm:$0xff] %vm345, %v332
      %348 = vst.msk [vmem:[%s167 + $0x10] sm:$0xff] %vm345, %v337
      %349 = vst.msk [vmem:[%s167 + $0x18] sm:$0xff] %vm345, %v342
      %p350 = scmp.lt.s32.totalorder %s14, 15
      %s351 = scalar_select %p350, %s14, 15
      %s352 = smul.addr %s351, 4
      %s353 = smul.addr %s352, 8
      %s354 = scalar_lea.vmem %s3, %s353
      // Predicated region
      $region33: #{video_semantic_segmentor_forward.3} parent=31 // pred_check
        %p355 = pneg %p100
      $region34: #{video_semantic_segmentor_forward.3} parent=31 // pred_check_branch
        %357 = sbr.rel (%p355) target = $region36
      $region35: #{video_semantic_segmentor_forward.3} parent=31 // pred_region
        _
      $region36: #{video_semantic_segmentor_forward.3} parent=31 // pred_fallthru
        _
    $region32: #{video_semantic_segmentor_forward.3} parent=5 // pred_fallthru
      _
    %p358 = scmp.le.s32.totalorder 2, %s9
    // Predicated region
    $region37: #{video_semantic_segmentor_forward.3} parent=5 // pred_check
      %p359 = pneg %p358
    $region38: #{video_semantic_segmentor_forward.3} parent=5 // pred_check_branch
      %361 = sbr.rel (%p359) target = $region40
    $region39: #{video_semantic_segmentor_forward.3} parent=5 // pred_region
      %s362 = ssub.s32 %s9, 2
      // Predicated region
      $region41: #{video_semantic_segmentor_forward.3} parent=39 // pred_check
        %p363 = pneg %p106
      $region42: #{video_semantic_segmentor_forward.3} parent=39 // pred_check_branch
        %365 = sbr.rel (%p363) target = $region44
      $region43: #{video_semantic_segmentor_forward.3} parent=39 // pred_region
        %p366 = scmp.lt.s32.totalorder %s15, 15
        %s367 = scalar_select %p366, %s15, 15
        %s368 = smul.addr %s367, 4
        %s369 = smul.addr %s368, 8
        %s370 = scalar_lea.vmem %s3, %s369
      $region44: #{video_semantic_segmentor_forward.3} parent=39 // pred_fallthru
        _
    $region40: #{video_semantic_segmentor_forward.3} parent=5 // pred_fallthru
      _
  $region6: #{video_semantic_segmentor_forward.3} parent=0 // loop_footer
    %s13 = sadd.s32 1, %s9
  $region7: #{video_semantic_segmentor_forward.3} parent=0 // loop_footer_branch
    %8 = sbr.rel target = $region3
  $region8: #{video_semantic_segmentor_forward.3} parent=0 // loop_exit
    _

</llo_original>
